<compile_context>
chip_gen: v5e
topology: v5e:2x2
jax: 0.10.0
libtpu: 0.0.40
codegen_flags: <defaults>
</compile_context>

<pallas_src>
import jax
import jax.numpy as jnp
from jax.experimental import pallas as pl
from jax.experimental.pallas import tpu as pltpu


def classifier_kernel(e_ref, mix_ref, m_ref, o_ref):
    tb, S, _ = mix_ref.shape            # (TILE_B, S, 1)
    K = m_ref.shape[0]

    e = e_ref[...]                      # (TILE_B*S, D) embedded tokens
    mix = mix_ref[...]                  # (TILE_B, S, 1) mix logits
    m = m_ref[...]                      # (K, D)        unit-norm measurement vectors

    # softmax over the sequence axis (torch: F.softmax(mix, dim=1))
    mx = jnp.max(mix, axis=1, keepdims=True)               # (tb, 1, 1)
    ew = jnp.exp(mix - mx)                                  # (tb, S, 1)
    sum_ew = jnp.sum(ew, axis=1, keepdims=True)             # (tb, 1, 1)

    # per-token squared norm; fold 1/||e||^2 and the softmax denom into ONE reciprocal.
    # NOTE: no epsilon on nrm2, matching the PyTorch reference (zero-norm rows
    # would be Inf/NaN there too).
    nrm2 = jnp.sum(e * e, axis=-1, keepdims=True)           # (tb*S, 1)
    nrm2 = nrm2.reshape(tb, S, 1)                           # layout-preserving split (S == 8)
    # approx=True (EUP estimate) is available, kept exact to hold the 1e-3/1e-4 check.
    scale = ew * pl.reciprocal(nrm2 * sum_ew, approx=False)  # (tb, S, 1)

    # p_k = sum_s scale_s * (m_k . e_s)^2  -- single MXU contraction over D
    me = jax.lax.dot_general(
        e, m, (((1,), (1,)), ((), ())),
        preferred_element_type=jnp.float32)                 # (tb*S, K)
    sq = (me * me).reshape(tb, S, K)                        # layout-preserving split
    p = jnp.sum(sq * scale, axis=1, keepdims=True)          # (tb, 1, K)

    o_ref[...] = jnp.log(p + 1e-7)


def _pick_tile_b(B, S, D, max_tile=256, vmem_budget=8 << 20):
    """Largest batch tile that divides B, capped by a per-buffer VMEM budget
    (budget chosen conservatively so double-buffered tiles fit v7x's 64 MiB VMEM)."""
    cap = max(1, min(max_tile, vmem_budget // (S * D * 4)))
    t = min(B, cap)
    while B % t:
        t -= 1
    return t


def base_classifier_forward(x_ids, embed_table, mix_table, meas):
    """x_ids: [B, S] int32 token ids."""
    B, S = x_ids.shape
    V, D = embed_table.shape
    K = meas.shape[0]

    # Glue: embedding lookup (data-dependent gather) stays in XLA; E is produced
    # directly in the flattened (B*S, D) layout the kernel consumes (one pass).
    # TODO(synk): the gather could move in-kernel (scalar-prefetch x_ids +
    # per-token pltpu.make_async_copy from embed_table in pl.ANY) to halve HBM
    # traffic on large batches; kept in XLA here for robustness at tiny D.
    e_flat = embed_table[x_ids.reshape(-1)].astype(jnp.float32)     # (B*S, D)
    mix = mix_table[x_ids].astype(jnp.float32)[..., None]           # (B, S, 1)
    meas = meas.astype(jnp.float32)                                 # (K, D)

    tile_b = _pick_tile_b(B, S, D)

    out = pl.pallas_call(
        classifier_kernel,
        out_shape=jax.ShapeDtypeStruct((B, 1, K), jnp.float32),
        grid_spec=pltpu.PrefetchScalarGridSpec(
            num_scalar_prefetch=0,
            grid=(B // tile_b,),
            in_specs=[
                pl.BlockSpec((tile_b * S, D), lambda i: (i, 0)),
                pl.BlockSpec((tile_b, S, 1), lambda i: (i, 0, 0)),
                pl.BlockSpec((K, D), lambda i: (0, 0)),
            ],
            out_specs=pl.BlockSpec((tile_b, 1, K), lambda i: (i, 0, 0)),
        ),
        compiler_params=pltpu.CompilerParams(
            dimension_semantics=("parallel",)),
    )(e_flat, mix, meas)

    # torch: log(p.squeeze() + 1e-7) -> (B, K); log already applied in-kernel.
    return out[:, 0, :]


def reference_forward(x_ids, embed_table, mix_table, meas):
    e = embed_table[x_ids]                                 # (B, S, D)
    mix = mix_table[x_ids]                                 # (B, S)
    w = jax.nn.softmax(mix, axis=1)                        # (B, S)
    nrm2 = jnp.sum(e * e, axis=-1)                         # (B, S)
    rho = jnp.einsum('bs,bsd,bse->bde', w / nrm2, e, e)    # (B, D, D)
    p = jnp.einsum('kd,bde,ke->bk', meas, rho, meas)       # (B, K)
    return jnp.log(p + 1e-7)


if __name__ == "__main__":
    # Small, deterministic synthetic setup (stands in for GloVe-50d + tokenizer vocab).
    B, S, V, D, K = 2, 8, 100, 50, 2     # measurement_param(50, 2) -> D=50, K=2 classes

    key = jax.random.PRNGKey(0)
    k_emb, k_mix, k_meas, k_ids = jax.random.split(key, 4)

    embed_table = jax.random.normal(k_emb, (V, D), dtype=jnp.float32)        # embed_param
    mix_table = jax.random.normal(k_mix, (V,), dtype=jnp.float32)            # mix_param
    meas_raw = jax.random.normal(k_meas, (K, D), dtype=jnp.float32)          # measurement_param
    # apply_constraint(): measurement vectors are unit-norm projectors.
    meas = meas_raw / jnp.linalg.norm(meas_raw, axis=-1, keepdims=True)

    x_ids = jax.random.randint(k_ids, (B, S), 0, V, dtype=jnp.int32)

    out = base_classifier_forward(x_ids, embed_table, mix_table, meas)
    out = jax.block_until_ready(out)

    ref = reference_forward(x_ids, embed_table, mix_table, meas)
    assert out.shape == (B, K)
    assert jnp.allclose(out, ref, rtol=1e-3, atol=1e-4), (out, ref)

    # TODO(synk): apply_constraint() is a training-time parameter projection; only its
    # effect (unit-norm measurement vectors) is baked into the deterministic init here.
    print("KERNEL_OK")
</pallas_src>

<mosaic_0001>
module attributes {stable_mosaic.version = 11 : i64} {
  func.func @classifier_kernel(%arg0: i32, %arg1: memref<16x50xf32, #tpu.memory_space<vmem>>, %arg2: memref<2x8x1xf32, #tpu.memory_space<vmem>>, %arg3: memref<2x50xf32, #tpu.memory_space<vmem>>, %arg4: memref<2x1x2xf32, #tpu.memory_space<vmem>>) attributes {dimension_semantics = [#tpu.dimension_semantics<parallel>], iteration_bounds = array<i64: 1>, scalar_prefetch = 0 : i64, scratch_operands = 0 : i64, tpu.core_type = #tpu.core_type<tc>, window_params = [{transform_indices = @transform_0, window_bounds = array<i64: 16, 50>}, {transform_indices = @transform_1, window_bounds = array<i64: 2, 8, 1>}, {pipeline_mode = #tpu.pipeline_mode<synchronous>, transform_indices = @transform_2, window_bounds = array<i64: 2, 50>}, {transform_indices = @transform_3, window_bounds = array<i64: 2, 1, 2>}]} {
    %c0 = arith.constant 0 : index
    %c0_0 = arith.constant 0 : index
    %0 = vector.load %arg1[%c0, %c0_0] : memref<16x50xf32, #tpu.memory_space<vmem>>, vector<16x50xf32>
    %c0_1 = arith.constant 0 : index
    %c0_2 = arith.constant 0 : index
    %c0_3 = arith.constant 0 : index
    %1 = vector.load %arg2[%c0_1, %c0_2, %c0_3] : memref<2x8x1xf32, #tpu.memory_space<vmem>>, vector<2x8x1xf32>
    %c0_4 = arith.constant 0 : index
    %c0_5 = arith.constant 0 : index
    %2 = vector.load %arg3[%c0_4, %c0_5] : memref<2x50xf32, #tpu.memory_space<vmem>>, vector<2x50xf32>
    %cst = arith.constant dense<0xFF800000> : vector<2x1xf32>
    %3 = vector.multi_reduction <maximumf>, %1, %cst [1] : vector<2x8x1xf32> to vector<2x1xf32>
    %4 = vector.shape_cast %3 : vector<2x1xf32> to vector<2x1x1xf32>
    %5 = vector.broadcast %4 : vector<2x1x1xf32> to vector<2x8x1xf32>
    %6 = arith.subf %1, %5 : vector<2x8x1xf32>
    %7 = math.exp %6 : vector<2x8x1xf32>
    %cst_6 = arith.constant dense<0.000000e+00> : vector<2x1xf32>
    %8 = vector.multi_reduction <add>, %7, %cst_6 [1] : vector<2x8x1xf32> to vector<2x1xf32>
    %9 = vector.shape_cast %8 : vector<2x1xf32> to vector<2x1x1xf32>
    %10 = arith.mulf %0, %0 : vector<16x50xf32>
    %cst_7 = arith.constant dense<0.000000e+00> : vector<16xf32>
    %11 = vector.multi_reduction <add>, %10, %cst_7 [1] : vector<16x50xf32> to vector<16xf32>
    %12 = vector.shape_cast %11 : vector<16xf32> to vector<16x1xf32>
    %13 = vector.shape_cast %12 : vector<16x1xf32> to vector<2x8x1xf32>
    %14 = vector.broadcast %9 : vector<2x1x1xf32> to vector<2x8x1xf32>
    %15 = arith.mulf %13, %14 : vector<2x8x1xf32>
    %16 = tpu.reciprocal %15 : vector<2x8x1xf32> -> vector<2x8x1xf32>
    %17 = arith.mulf %7, %16 : vector<2x8x1xf32>
    %cst_8 = arith.constant dense<0.000000e+00> : vector<16x2xf32>
    %18 = tpu.matmul %0, %2, %cst_8 {dimension_numbers = #tpu.dot_dimension_numbers<[1], [1], [0], [0], [0, 0, 1, 0], [], []>} : vector<16x50xf32>, vector<2x50xf32>, vector<16x2xf32> -> vector<16x2xf32>
    %19 = arith.mulf %18, %18 : vector<16x2xf32>
    %20 = vector.shape_cast %19 : vector<16x2xf32> to vector<2x8x2xf32>
    %21 = vector.broadcast %17 : vector<2x8x1xf32> to vector<2x8x2xf32>
    %22 = arith.mulf %20, %21 : vector<2x8x2xf32>
    %cst_9 = arith.constant dense<0.000000e+00> : vector<2x2xf32>
    %23 = vector.multi_reduction <add>, %22, %cst_9 [1] : vector<2x8x2xf32> to vector<2x2xf32>
    %24 = vector.shape_cast %23 : vector<2x2xf32> to vector<2x1x2xf32>
    %cst_10 = arith.constant 1.000000e-07 : f32
    %25 = vector.broadcast %cst_10 : f32 to vector<2x1x2xf32>
    %26 = arith.addf %24, %25 : vector<2x1x2xf32>
    %27 = math.log %26 : vector<2x1x2xf32>
    %c0_11 = arith.constant 0 : index
    %c0_12 = arith.constant 0 : index
    %c0_13 = arith.constant 0 : index
    %28 = vector.load %arg4[%c0_11, %c0_12, %c0_13] : memref<2x1x2xf32, #tpu.memory_space<vmem>>, vector<2x1x2xf32>
    tpu.vector_store %arg4[%c0_11, %c0_12, %c0_13], %27 {strides = array<i32>} : memref<2x1x2xf32, #tpu.memory_space<vmem>>, vector<2x1x2xf32>,
    return
  }
  func.func @transform_0(%arg0: i32) -> (i32, i32) {
    %c0_i32 = arith.constant 0 : i32
    %c0_i32_0 = arith.constant 0 : i32
    return %arg0, %c0_i32 : i32, i32
  }
  func.func @transform_1(%arg0: i32) -> (i32, i32, i32) {
    %c0_i32 = arith.constant 0 : i32
    %c0_i32_0 = arith.constant 0 : i32
    %c0_i32_1 = arith.constant 0 : i32
    return %arg0, %c0_i32, %c0_i32_0 : i32, i32, i32
  }
  func.func @transform_2(%arg0: i32) -> (i32, i32) {
    %c0_i32 = arith.constant 0 : i32
    %c0_i32_0 = arith.constant 0 : i32
    %c0_i32_1 = arith.constant 0 : i32
    return %c0_i32, %c0_i32_0 : i32, i32
  }
  func.func @transform_3(%arg0: i32) -> (i32, i32, i32) {
    %c0_i32 = arith.constant 0 : i32
    %c0_i32_0 = arith.constant 0 : i32
    %c0_i32_1 = arith.constant 0 : i32
    return %arg0, %c0_i32, %c0_i32_0 : i32, i32, i32
  }
}

</mosaic_0001>

<llo_original>
// kernel: tpu_custom_call.1
$region0: #{tpu_custom_call.1}
  #allocation0 [shape = 'u32[]', space=smem, size = 0x4, offset = 0x4, fixed_abs, tag = 'smem constant byte address 0x4 - core index']
  #allocation1 [shape = 'u32[72,128]{1,0:T(1,128)}', space=vmem, size = 0x9000, scoped, tag = 'internal scratch']
  %s0 = inlined_call_operand.vmem [shape: f32[16,50], index: 0, kind: input, shape index: {}]
  %s1 = inlined_call_operand.vmem [shape: f32[2,8,1], index: 1, kind: input, shape index: {}]
  %s2 = inlined_call_operand.vmem [shape: f32[2,50], index: 2, kind: input, shape index: {}]
  %s3 = inlined_call_operand.hbm [shape: f32[2,1,2], index: 3, kind: output, shape index: {}]
  %s4 = sld [smem:[#allocation0]]
  $region22: #{tpu_custom_call.1} parent=0
    _
  %s6 = ssub.s32 1, %s4
  %s7 = scalar_select 0, %s6, %s4
  $region1: #{tpu_custom_call.1} parent=0
    #allocation2 [shape = 'u8[1024]{0}', space=vmem, size = 0x400, scoped, tag = 'output window, operand 0, single buffered']
    #allocation3 [shape = 's32[1]{0}', space=sflag, size = 0x4, scoped, tag = 'scoped memory for tpu_custom_call.1']
    %8 = vsyncpa [#allocation3], 0
    // Predicated region
    $region2: #{tpu_custom_call.1} parent=1 // pred_check
      _
    $region3: #{tpu_custom_call.1} parent=1 // pred_check_branch
      %10 = sbr.rel (0) target = $region5
    $region4: #{tpu_custom_call.1} parent=1 // pred_region
      _
    $region5: #{tpu_custom_call.1} parent=1 // pred_fallthru
      _
    // Predicated region
    $region6: #{tpu_custom_call.1} parent=1 // pred_check
      _
    $region7: #{tpu_custom_call.1} parent=1 // pred_check_branch
      %12 = sbr.rel (0) target = $region9
    $region8: #{tpu_custom_call.1} parent=1 // pred_region
      _
    $region9: #{tpu_custom_call.1} parent=1 // pred_fallthru
      _
    // Predicated region
    $region10: #{tpu_custom_call.1} parent=1 // pred_check
      _
    $region11: #{tpu_custom_call.1} parent=1 // pred_check_branch
      %14 = sbr.rel (0) target = $region13
    $region12: #{tpu_custom_call.1} parent=1 // pred_region
      _
    $region13: #{tpu_custom_call.1} parent=1 // pred_fallthru
      _
    %v15 = vld [vmem:[%s0] sm:$0xff]
    %v16 = vld [vmem:[%s0 + $0x8] sm:$0xff]
    %v17 = vld [vmem:[%s1] sm:$0xff]
    %v18 = vld [vmem:[%s1 + $0x8] sm:$0xff]
    %v19 = vld [vmem:[%s2] sm:$0x3]
    %vm20 = vcmask 7168
    %v21 = vsel %vm20, %v17, -inf
    %v22 = vrot.slane %v21, 4
    %v23 = vmax.f32 %v21, %v22
    %v24 = vrot.slane %v23, 2
    %v25 = vmax.f32 %v23, %v24
    %v26 = vrot.slane %v25, 1
    %v27 = vmax.f32 %v25, %v26
    %v28 = vsel %vm20, %v18, -inf
    %v29 = vrot.slane %v28, 4
    %v30 = vmax.f32 %v28, %v29
    %v31 = vrot.slane %v30, 2
    %v32 = vmax.f32 %v30, %v31
    %v33 = vrot.slane %v32, 1
    %v34 = vmax.f32 %v32, %v33
    %v35 = vsub.f32 %v17, %v27
    %v36 = vsub.f32 %v18, %v34
    %v37 = vmul.f32 %v35, 1.442695
    %v38 = vpow.pop %v37
    %v39 = vmul.f32 %v36, 1.442695
    %v40 = vpow.pop %v39
    %v41 = vsel %vm20, %v38, 0.0
    %v42 = vrot.slane %v41, 4
    %v43 = vadd.f32 %v41, %v42
    %v44 = vrot.slane %v43, 2
    %v45 = vadd.f32 %v43, %v44
    %v46 = vrot.slane %v45, 1
    %v47 = vadd.f32 %v45, %v46
    %v48 = vsel %vm20, %v40, 0.0
    %v49 = vrot.slane %v48, 4
    %v50 = vadd.f32 %v48, %v49
    %v51 = vrot.slane %v50, 2
    %v52 = vadd.f32 %v50, %v51
    %v53 = vrot.slane %v52, 1
    %v54 = vadd.f32 %v52, %v53
    %v55 = vmul.f32 %v15, %v15
    %v56 = vmul.f32 %v16, %v16
    %vm57 = vcmask 408576
    %v58 = vsel %vm57, %v55, 0.0
    %59 = vadd.xlane.f32.xlu0 %v58
    %v60 = vpop.xlane.xlu0 %59
    %v61 = vsel %vm57, %v56, 0.0
    %62 = vadd.xlane.f32.xlu0 %v61
    %v63 = vpop.xlane.xlu0 %62
    %v64 = vmul.f32 %v60, %v47
    %v65 = vmul.f32 %v63, %v54
    %v66 = vrcp.pop %v64
    %v67 = vmul.f32 %v64, %v66
    %v68 = vsub.f32 1.0, %v67
    %v69 = vmul.f32 %v66, %v68
    %v70 = vadd.f32 %v66, %v69
    %vm71 = vweird.f32 %v64
    %vm72 = vweird.f32 %v66
    %vm73 = vmor %vm71, %vm72
    %v74 = vsel %vm73, %v66, %v70
    %v75 = vand.u32 2147483647, %v64
    %vm76 = vcmp.eq.f32.partialorder %v75, 8.507059e+37
    %v77 = vand.u32 %v64, 2147483648
    %v78 = vor.u32 1.1754944e-38, %v77
    %v79 = vsel %vm76, %v78, %v74
    %v80 = vrcp.pop %v65
    %v81 = vmul.f32 %v65, %v80
    %v82 = vsub.f32 1.0, %v81
    %v83 = vmul.f32 %v80, %v82
    %v84 = vadd.f32 %v80, %v83
    %vm85 = vweird.f32 %v65
    %vm86 = vweird.f32 %v80
    %vm87 = vmor %vm85, %vm86
    %v88 = vsel %vm87, %v80, %v84
    %v89 = vand.u32 2147483647, %v65
    %vm90 = vcmp.eq.f32.partialorder %v89, 8.507059e+37
    %v91 = vand.u32 %v65, 2147483648
    %v92 = vor.u32 1.1754944e-38, %v91
    %v93 = vsel %vm90, %v92, %v88
    %v94 = vmul.f32 %v38, %v79
    %v95 = vmul.f32 %v40, %v93
    %v97 = vsel %vm57, %v15, 0
    %v100 = vsel %vm57, %v16, 0
    %v103 = vsel %vm57, %v19, 0
    %105 = vmatpush.xpose.msra.mxu0 0.0
    %106 = vmatpush.xpose.msra.mxu0 0.0
    %107 = vmatpush.xpose.msra.mxu0 0.0
    %108 = vmatpush.xpose.msra.mxu0 0.0
    %109 = vmatpush.xpose.msra.mxu0 0.0
    %110 = vmatpush.xpose.msra.mxu0 0.0
    %111 = vmatpush.xpose.msra.mxu0 0.0
    %112 = vmatpush.xpose.msra.mxu0 0.0
    %113 = vmatpush.xpose.msra.mxu0 0.0
    %114 = vmatpush.xpose.msra.mxu0 0.0
    %115 = vmatpush.xpose.msra.mxu0 0.0
    %116 = vmatpush.xpose.msra.mxu0 0.0
    %117 = vmatpush.xpose.msra.mxu0 0.0
    %118 = vmatpush.xpose.msra.mxu0 0.0
    %119 = vmatpush.xpose.msra.mxu0 0.0
    %120 = vmatpush.xpose.msra.mxu0 %v103
    %121 = vmatmul.f32.gmra.mxu0 %v97
    %v122 = vpop.f32.mrf.mxu0
    %v123 = vadd.f32 0.0, %v122
    %124 = vmatmul.f32.gmra.mxu0 %v100
    %v125 = vpop.f32.mrf.mxu0
    %v126 = vadd.f32 0.0, %v125
    %127 = vdwg.mxu0
    %v128 = vmul.f32 %v123, %v123
    %v129 = vmul.f32 %v126, %v126
    %131 = vset.pattern.permute.xlu0 0
    %132 = vperm.xlu0 %131, %v94
    %v133 = vpop.permute.xlu0 %132
    %136 = vset.pattern.permute.xlu0 0
    %137 = vperm.xlu0 %136, %v95
    %v138 = vpop.permute.xlu0 %137
    %v140 = vmul.f32 %v128, %v133
    %v141 = vmul.f32 %v129, %v138
    %vm142 = vcmask 15360
    %v143 = vsel %vm142, %v140, 0.0
    %v144 = vrot.slane %v143, 4
    %v145 = vadd.f32 %v143, %v144
    %v146 = vrot.slane %v145, 2
    %v147 = vadd.f32 %v145, %v146
    %v148 = vrot.slane %v147, 1
    %v149 = vadd.f32 %v147, %v148
    %v150 = vsel %vm142, %v141, 0.0
    %v151 = vrot.slane %v150, 4
    %v152 = vadd.f32 %v150, %v151
    %v153 = vrot.slane %v152, 2
    %v154 = vadd.f32 %v152, %v153
    %v155 = vrot.slane %v154, 1
    %v156 = vadd.f32 %v154, %v155
    %v157 = vadd.f32 %v149, 1e-07
    %v158 = vadd.f32 %v156, 1e-07
    %v159 = vlog2.pop %v157
    %v160 = vmul.f32 %v159, 0.6931472
    %v161 = vlog2.pop %v158
    %v162 = vmul.f32 %v161, 0.6931472
    %vm163 = vcmask 8192
    %164 = vst.msk [vmem:[#allocation2] sm:$0x1] %vm163, %v160
    %165 = vst.msk [vmem:[#allocation2 + $0x1] sm:$0x1] %vm163, %v162
    // Predicated region
    $region14: #{tpu_custom_call.1} parent=1 // pred_check
      _
    $region15: #{tpu_custom_call.1} parent=1 // pred_check_branch
      %167 = sbr.rel (0) target = $region17
    $region16: #{tpu_custom_call.1} parent=1 // pred_region
      %169 = vsyncadd [#allocation3], 0
      %s170 = sshll.u32 [#allocation2], 4
      %s171 = int_to_ptr.vmem [resolvable:$true] %s170
      %s172 = sshll.u32 %s3, 4
      %s173 = int_to_ptr.hbm [resolvable:$true] %s172
      %178 = dma.vmem_to_hbm [thread:$0]  %s171, 32, %s173, [#allocation3], 16, 16, 1
    $region17: #{tpu_custom_call.1} parent=1 // pred_fallthru
      _
    // Predicated region
    $region18: #{tpu_custom_call.1} parent=1 // pred_check
      _
    $region19: #{tpu_custom_call.1} parent=1 // pred_check_branch
      %180 = sbr.rel (0) target = $region21
    $region20: #{tpu_custom_call.1} parent=1 // pred_region
      %182 = dma.done [#allocation3], 32
    $region21: #{tpu_custom_call.1} parent=1 // pred_fallthru
      _
    %183 = vsyncpa [#allocation3], 1

</llo_original>
